<compile_context>
chip_gen: v7x
topology: tpu7x:2x2x1
jax: 0.10.0
libtpu: 0.0.40
codegen_flags: <defaults>
</compile_context>

<pallas_src>
import functools

import jax
import jax.numpy as jnp
from jax.experimental import pallas as pl
from jax.experimental.pallas import tpu as pltpu

NEIGHBORHOOD_SIZE = 8
KERNEL_TAPS = NEIGHBORHOOD_SIZE + 1  # 9


def _faceconv_gemm_kernel(g_ref, w_ref, b_ref, out_ref):
  """One face block: (TM, K*C) @ (K*C, O) + (1, O) -> (TM, O), fused bias.

  g / w are bf16 (MXU-native); accumulation and the bias add happen in f32.
  """
  acc = jnp.dot(g_ref[...], w_ref[...], preferred_element_type=jnp.float32)
  out_ref[...] = (acc + b_ref[...]).astype(out_ref.dtype)


def init_faceconv_params(key, in_channels, out_channels):
  """Mirrors torch.nn.Conv2d(in_channels, out_channels, (1, 9)) default init."""
  k = KERNEL_TAPS
  fan_in = in_channels * k
  bound = 1.0 / float(fan_in) ** 0.5
  kw, kb = jax.random.split(key)
  weight = jax.random.uniform(kw, (out_channels, in_channels, 1, k),
                              jnp.float32, -bound, bound)
  bias = jax.random.uniform(kb, (out_channels,), jnp.float32, -bound, bound)
  return {"weight": weight, "bias": bias}


def _round_up(v, m):
  return ((v + m - 1) // m) * m


def _choose_block_m(m_faces, target_block_m):
  """Face-block (sublane) tile size.

  * tiny M: a single block of round_up(M, 8) -- grid bookkeeping isn't worth it.
  * otherwise: large tiles (default 512) to amortize the ~0.35us per-step
    pipeline overhead and feed the MXU long LHS streams, but never fewer than
    two blocks so v7x's two TensorCores both get work on the "parallel" axis.
  """
  m8 = _round_up(max(m_faces, 8), 8)
  if m8 <= 256:
    return m8
  return max(8, min(target_block_m, _round_up(pl.cdiv(m8, 2), 8)))


@functools.partial(jax.jit, static_argnames=("pad_size", "block_m"))
def faceconv_forward(params, x, face_neighborhood, face_is_pad, *,
                     pad_size, block_m=512):
  n_faces, in_c = x.shape
  m_faces, k_taps = face_neighborhood.shape
  assert k_taps == KERNEL_TAPS
  assert face_is_pad.shape[0] == pad_size
  out_c = params["weight"].shape[0]
  kc = k_taps * in_c

  # --- create_faceconv_input without materializing padded_x -----------------
  # padded_x[~face_is_pad] = x ; padded_x[face_is_pad] = 0.  Remap neighbor
  # indices from padded space to rows of x (pad slots -> an appended zero row),
  # so no pad_size-sized feature table is ever built.
  not_pad = jnp.logical_not(face_is_pad)
  pos_in_x = jnp.cumsum(not_pad.astype(jnp.int32)) - 1            # (pad_size,)
  pos_in_x = jnp.where(not_pad, pos_in_x, n_faces)                # pads -> zero row
  remapped = jnp.take(pos_in_x, face_neighborhood, axis=0)        # (M, K)

  # Block padding is applied to the cheap (M, 9) int32 index table (extra rows
  # point at the zero row), NOT to the 9x-expanded feature tensor, so no extra
  # full-size HBM copy is ever made.
  bm = _choose_block_m(m_faces, block_m)
  m_total = _round_up(m_faces, bm)
  remapped = jnp.pad(remapped, ((0, m_total - m_faces), (0, 0)),
                     constant_values=n_faces)

  # bf16 operands for the MXU (higher MXU rate on all generations, half the HBM
  # bytes of the dominant g stream); accumulation stays f32 inside the kernel.
  x_aug = jnp.concatenate(
      [x.astype(jnp.bfloat16), jnp.zeros((1, in_c), jnp.bfloat16)], axis=0)
  # TODO(synk): per-face gather handled by XLA; see header comment for why an
  # in-kernel gather is not used.
  g = jnp.take(x_aug, remapped.reshape(-1), axis=0).reshape(m_total, kc)

  # --- Conv2d (1, K) as one fused GEMM per face block -----------------------
  w = params["weight"]                                            # (O, C, 1, K)
  w2 = jnp.transpose(w[:, :, 0, :], (2, 1, 0)).reshape(kc, out_c)
  w2 = w2.astype(jnp.bfloat16)
  b2 = params["bias"].astype(jnp.float32).reshape(1, out_c)

  out = pl.pallas_call(
      _faceconv_gemm_kernel,
      out_shape=jax.ShapeDtypeStruct((m_total, out_c), jnp.float32),
      grid=(m_total // bm,),
      in_specs=[
          pl.BlockSpec((bm, kc), lambda i: (i, 0)),     # gathered features
          pl.BlockSpec((kc, out_c), lambda i: (0, 0)),  # fused weight (const, DMA'd once)
          pl.BlockSpec((1, out_c), lambda i: (0, 0)),   # bias (const, DMA'd once)
      ],
      out_specs=pl.BlockSpec((bm, out_c), lambda i: (i, 0)),
      compiler_params=pltpu.CompilerParams(
          dimension_semantics=("parallel",)),
  )(g, w2, b2)
  return out[:m_faces].astype(x.dtype)


def faceconv_reference(params, x, face_neighborhood, face_is_pad, pad_size):
  """Pure-JAX mirror of the PyTorch module, used only for validation."""
  n_faces, in_c = x.shape
  nonpad_idx = jnp.nonzero(jnp.logical_not(face_is_pad), size=n_faces)[0]
  padded_x = jnp.zeros((pad_size, in_c), x.dtype).at[nonpad_idx].set(x)
  gathered = padded_x[face_neighborhood]                           # (M, K, C)
  w = params["weight"][:, :, 0, :]                                 # (O, C, K)
  return jnp.einsum("mkc,ock->mo", gathered, w) + params["bias"][None, :]


if __name__ == "__main__":
  in_channels, out_channels = 32, 128
  num_faces, pad_size = 100, 120

  key = jax.random.PRNGKey(0)
  kp, kx, kn = jax.random.split(key, 3)
  params = init_faceconv_params(kp, in_channels, out_channels)

  # 20 pad slots interleaved among 120 padded rows -> 100 real faces.
  face_is_pad = (jnp.arange(pad_size) % 6) == 5
  assert int(jnp.sum(jnp.logical_not(face_is_pad))) == num_faces

  x = jax.random.normal(kx, (num_faces, in_channels), jnp.float32)
  face_neighborhood = jax.random.randint(
      kn, (num_faces, KERNEL_TAPS), 0, pad_size, dtype=jnp.int32)

  y = faceconv_forward(params, x, face_neighborhood, face_is_pad,
                       pad_size=pad_size)
  jax.block_until_ready(y)
  assert y.shape == (num_faces, out_channels) and y.dtype == jnp.float32

  y_ref = faceconv_reference(params, x, face_neighborhood, face_is_pad, pad_size)
  max_err = float(jnp.max(jnp.abs(y - y_ref)))
  # bf16 MXU operands with f32 accumulation: tolerance loosened vs f32 reference.
  assert jnp.allclose(y, y_ref, rtol=2e-2, atol=5e-2), max_err
  print("KERNEL_OK")
</pallas_src>

<mosaic_0001>
module attributes {stable_mosaic.version = 11 : i64} {
  func.func @_faceconv_gemm_kernel(%arg0: i32, %arg1: memref<104x288xbf16, #tpu.memory_space<vmem>>, %arg2: memref<288x128xbf16, #tpu.memory_space<vmem>>, %arg3: memref<1x128xf32, #tpu.memory_space<vmem>>, %arg4: memref<104x128xf32, #tpu.memory_space<vmem>>) attributes {dimension_semantics = [#tpu.dimension_semantics<parallel>], iteration_bounds = array<i64: 1>, scalar_prefetch = 0 : i64, scratch_operands = 0 : i64, tpu.core_type = #tpu.core_type<tc>, window_params = [{transform_indices = @transform_0, window_bounds = array<i64: 104, 288>}, {pipeline_mode = #tpu.pipeline_mode<synchronous>, transform_indices = @transform_1, window_bounds = array<i64: 288, 128>}, {pipeline_mode = #tpu.pipeline_mode<synchronous>, transform_indices = @transform_2, window_bounds = array<i64: 1, 128>}, {transform_indices = @transform_3, window_bounds = array<i64: 104, 128>}]} {
    %c0 = arith.constant 0 : index
    %c0_0 = arith.constant 0 : index
    %0 = vector.load %arg1[%c0, %c0_0] : memref<104x288xbf16, #tpu.memory_space<vmem>>, vector<104x288xbf16>
    %c0_1 = arith.constant 0 : index
    %c0_2 = arith.constant 0 : index
    %1 = vector.load %arg2[%c0_1, %c0_2] : memref<288x128xbf16, #tpu.memory_space<vmem>>, vector<288x128xbf16>
    %cst = arith.constant dense<0.000000e+00> : vector<104x128xf32>
    %2 = tpu.matmul %0, %1, %cst {dimension_numbers = #tpu.dot_dimension_numbers<[1], [0], [0], [1], [0, 0, 1, 1], [], []>} : vector<104x288xbf16>, vector<288x128xbf16>, vector<104x128xf32> -> vector<104x128xf32>
    %c0_3 = arith.constant 0 : index
    %c0_4 = arith.constant 0 : index
    %3 = vector.load %arg3[%c0_3, %c0_4] : memref<1x128xf32, #tpu.memory_space<vmem>>, vector<1x128xf32>
    %4 = vector.broadcast %3 : vector<1x128xf32> to vector<104x128xf32>
    %5 = arith.addf %2, %4 : vector<104x128xf32>
    %c0_5 = arith.constant 0 : index
    %c0_6 = arith.constant 0 : index
    %6 = vector.load %arg4[%c0_5, %c0_6] : memref<104x128xf32, #tpu.memory_space<vmem>>, vector<104x128xf32>
    tpu.vector_store %arg4[%c0_5, %c0_6], %5 {strides = array<i32>} : memref<104x128xf32, #tpu.memory_space<vmem>>, vector<104x128xf32>,
    return
  }
  func.func @transform_0(%arg0: i32) -> (i32, i32) {
    %c0_i32 = arith.constant 0 : i32
    %c0_i32_0 = arith.constant 0 : i32
    return %arg0, %c0_i32 : i32, i32
  }
  func.func @transform_1(%arg0: i32) -> (i32, i32) {
    %c0_i32 = arith.constant 0 : i32
    %c0_i32_0 = arith.constant 0 : i32
    %c0_i32_1 = arith.constant 0 : i32
    return %c0_i32, %c0_i32_0 : i32, i32
  }
  func.func @transform_2(%arg0: i32) -> (i32, i32) {
    %c0_i32 = arith.constant 0 : i32
    %c0_i32_0 = arith.constant 0 : i32
    %c0_i32_1 = arith.constant 0 : i32
    return %c0_i32, %c0_i32_0 : i32, i32
  }
  func.func @transform_3(%arg0: i32) -> (i32, i32) {
    %c0_i32 = arith.constant 0 : i32
    %c0_i32_0 = arith.constant 0 : i32
    return %arg0, %c0_i32 : i32, i32
  }
}

</mosaic_0001>

<llo_original>
// kernel: faceconv_forward.1
$region0: #{faceconv_forward.1}
  #allocation0 [shape = 'u32[]', space=smem, size = 0x4, offset = 0x4, fixed_abs, tag = 'smem constant byte address 0x4 - core index']
  #allocation1 [shape = 'u32[144,128]{1,0:T(1,128)}', space=vmem, size = 0x12000, scoped, tag = 'internal scratch']
  %s0 = inlined_call_operand.vmem [shape: bf16[104,288], index: 0, kind: input, shape index: {}]
  %s1 = inlined_call_operand.vmem [shape: bf16[288,128], index: 1, kind: input, shape index: {}]
  %s2 = inlined_call_operand.vmem [shape: f32[1,128], index: 2, kind: input, shape index: {}]
  %s3 = inlined_call_operand.hbm [shape: f32[104,128], index: 3, kind: output, shape index: {}]
  %s4 = sld [smem:[#allocation0]]
  $region22: #{faceconv_forward.1} parent=0
    _
  %s6 = ssub.s32 1, %s4
  %s7 = scalar_select 0, %s6, %s4
  $region1: #{faceconv_forward.1} parent=0
    #allocation2 [shape = 'u8[53248]{0}', space=vmem, size = 0xd000, scoped, tag = 'output window, operand 0, single buffered']
    #allocation3 [shape = 's32[1]{0}', space=sflag, size = 0x4, scoped, tag = 'scoped memory for faceconv_forward.1']
    %8 = vsyncpa [#allocation3], 0
    // Predicated region
    $region2: #{faceconv_forward.1} parent=1 // pred_check
      _
    $region3: #{faceconv_forward.1} parent=1 // pred_check_branch
      %10 = sbr.rel (0) target = $region5
    $region4: #{faceconv_forward.1} parent=1 // pred_region
      _
    $region5: #{faceconv_forward.1} parent=1 // pred_fallthru
      _
    // Predicated region
    $region6: #{faceconv_forward.1} parent=1 // pred_check
      _
    $region7: #{faceconv_forward.1} parent=1 // pred_check_branch
      %12 = sbr.rel (0) target = $region9
    $region8: #{faceconv_forward.1} parent=1 // pred_region
      _
    $region9: #{faceconv_forward.1} parent=1 // pred_fallthru
      _
    // Predicated region
    $region10: #{faceconv_forward.1} parent=1 // pred_check
      _
    $region11: #{faceconv_forward.1} parent=1 // pred_check_branch
      %14 = sbr.rel (0) target = $region13
    $region12: #{faceconv_forward.1} parent=1 // pred_region
      _
    $region13: #{faceconv_forward.1} parent=1 // pred_fallthru
      _
    %v16 = vld [vmem:[%s0] sm:$0xff]
    %v17 = vld [vmem:[%s0 + $0x8] sm:$0xf]
    %v18 = vld [vmem:[%s0 + $0xc] sm:$0xff]
    %v19 = vld [vmem:[%s0 + $0x14] sm:$0xf]
    %v20 = vld [vmem:[%s0 + $0x18] sm:$0xff]
    %v21 = vld [vmem:[%s0 + $0x20] sm:$0xf]
    %v22 = vld [vmem:[%s0 + $0x24] sm:$0xff]
    %v23 = vld [vmem:[%s0 + $0x2c] sm:$0xf]
    %v24 = vld [vmem:[%s0 + $0x30] sm:$0xff]
    %v25 = vld [vmem:[%s0 + $0x38] sm:$0xf]
    %v26 = vld [vmem:[%s0 + $0x3c] sm:$0xff]
    %v27 = vld [vmem:[%s0 + $0x44] sm:$0xf]
    %v28 = vld [vmem:[%s0 + $0x48] sm:$0xff]
    %v29 = vld [vmem:[%s0 + $0x50] sm:$0xf]
    %v30 = vld [vmem:[%s0 + $0x54] sm:$0xff]
    %v31 = vld [vmem:[%s0 + $0x5c] sm:$0xf]
    %v32 = vld [vmem:[%s0 + $0x60] sm:$0xff]
    %v33 = vld [vmem:[%s0 + $0x68] sm:$0xf]
    %v34 = vld [vmem:[%s0 + $0x6c] sm:$0xff]
    %v35 = vld [vmem:[%s0 + $0x74] sm:$0xf]
    %v36 = vld [vmem:[%s0 + $0x78] sm:$0xff]
    %v37 = vld [vmem:[%s0 + $0x80] sm:$0xf]
    %v38 = vld [vmem:[%s0 + $0x84] sm:$0xff]
    %v39 = vld [vmem:[%s0 + $0x8c] sm:$0xf]
    %v40 = vld [vmem:[%s0 + $0x90] sm:$0xff]
    %v41 = vld [vmem:[%s0 + $0x98] sm:$0xf]
    %v42 = vld [vmem:[%s1] sm:$0xf]
    %v43 = vld [vmem:[%s1 + $0x4] sm:$0xf]
    %v44 = vld [vmem:[%s1 + $0x8] sm:$0xf]
    %v45 = vld [vmem:[%s1 + $0xc] sm:$0xf]
    %v46 = vld [vmem:[%s1 + $0x10] sm:$0xf]
    %v47 = vld [vmem:[%s1 + $0x14] sm:$0xf]
    %v48 = vld [vmem:[%s1 + $0x18] sm:$0xf]
    %v49 = vld [vmem:[%s1 + $0x1c] sm:$0xf]
    %v50 = vld [vmem:[%s1 + $0x20] sm:$0xf]
    %v51 = vld [vmem:[%s1 + $0x24] sm:$0xf]
    %v52 = vld [vmem:[%s1 + $0x28] sm:$0xf]
    %v53 = vld [vmem:[%s1 + $0x2c] sm:$0xf]
    %v54 = vld [vmem:[%s1 + $0x30] sm:$0xf]
    %v55 = vld [vmem:[%s1 + $0x34] sm:$0xf]
    %v56 = vld [vmem:[%s1 + $0x38] sm:$0xf]
    %v57 = vld [vmem:[%s1 + $0x3c] sm:$0xf]
    %v58 = vld [vmem:[%s1 + $0x40] sm:$0xf]
    %v59 = vld [vmem:[%s1 + $0x44] sm:$0xf]
    %v60 = vld [vmem:[%s1 + $0x48] sm:$0xf]
    %v61 = vld [vmem:[%s1 + $0x4c] sm:$0xf]
    %v62 = vld [vmem:[%s1 + $0x50] sm:$0xf]
    %v63 = vld [vmem:[%s1 + $0x54] sm:$0xf]
    %v64 = vld [vmem:[%s1 + $0x58] sm:$0xf]
    %v65 = vld [vmem:[%s1 + $0x5c] sm:$0xf]
    %v66 = vld [vmem:[%s1 + $0x60] sm:$0xf]
    %v67 = vld [vmem:[%s1 + $0x64] sm:$0xf]
    %v68 = vld [vmem:[%s1 + $0x68] sm:$0xf]
    %v69 = vld [vmem:[%s1 + $0x6c] sm:$0xf]
    %v70 = vld [vmem:[%s1 + $0x70] sm:$0xf]
    %v71 = vld [vmem:[%s1 + $0x74] sm:$0xf]
    %v72 = vld [vmem:[%s1 + $0x78] sm:$0xf]
    %v73 = vld [vmem:[%s1 + $0x7c] sm:$0xf]
    %v74 = vld [vmem:[%s1 + $0x80] sm:$0xf]
    %v75 = vld [vmem:[%s1 + $0x84] sm:$0xf]
    %v76 = vld [vmem:[%s1 + $0x88] sm:$0xf]
    %v77 = vld [vmem:[%s1 + $0x8c] sm:$0xf]
    %v78 = vld [vmem:[%s2] sm:$0x1]
    %v80 = vlaneseq
    %v81 = vshrl.u32 %v80, 7
    %v82 = vsub.s32 0, %v81
    %v83 = vrot.slane %v78, %v82
    %v111 = vunpack.c.l.b16 %v16
    %v112 = vunpack.c.h.b16 %v16
    %v113 = vunpack.c.l.b16 %v17
    %v114 = vunpack.c.l.b16 %v18
    %v115 = vunpack.c.h.b16 %v18
    %v116 = vunpack.c.l.b16 %v19
    %v117 = vunpack.c.l.b16 %v20
    %v118 = vunpack.c.h.b16 %v20
    %v119 = vunpack.c.l.b16 %v21
    %v120 = vunpack.c.l.b16 %v22
    %v121 = vunpack.c.h.b16 %v22
    %v122 = vunpack.c.l.b16 %v23
    %v123 = vunpack.c.l.b16 %v24
    %v124 = vunpack.c.h.b16 %v24
    %v125 = vunpack.c.l.b16 %v25
    %v126 = vunpack.c.l.b16 %v26
    %v127 = vunpack.c.h.b16 %v26
    %v128 = vunpack.c.l.b16 %v27
    %v129 = vunpack.c.l.b16 %v28
    %v130 = vunpack.c.h.b16 %v28
    %v131 = vunpack.c.l.b16 %v29
    %v132 = vunpack.c.l.b16 %v30
    %v133 = vunpack.c.h.b16 %v30
    %v134 = vunpack.c.l.b16 %v31
    %v135 = vunpack.c.l.b16 %v32
    %v136 = vunpack.c.h.b16 %v32
    %v137 = vunpack.c.l.b16 %v33
    %v138 = vunpack.c.l.b16 %v34
    %v139 = vunpack.c.h.b16 %v34
    %v140 = vunpack.c.l.b16 %v35
    %v141 = vunpack.c.l.b16 %v36
    %v142 = vunpack.c.h.b16 %v36
    %v143 = vunpack.c.l.b16 %v37
    %v144 = vunpack.c.l.b16 %v38
    %v145 = vunpack.c.h.b16 %v38
    %v146 = vunpack.c.l.b16 %v39
    %v147 = vunpack.c.l.b16 %v40
    %v148 = vunpack.c.h.b16 %v40
    %v149 = vunpack.c.l.b16 %v41
    %v150 = vpack.c.b16 %v114, %v111
    %v151 = vpack.c.b16 %v115, %v112
    %v152 = vpack.c.b16 %v116, %v113
    %v153 = vpack.c.b16 %v120, %v117
    %v154 = vpack.c.b16 %v121, %v118
    %v155 = vpack.c.b16 %v122, %v119
    %v156 = vpack.c.b16 %v126, %v123
    %v157 = vpack.c.b16 %v127, %v124
    %v158 = vpack.c.b16 %v128, %v125
    %v159 = vpack.c.b16 %v132, %v129
    %v160 = vpack.c.b16 %v133, %v130
    %v161 = vpack.c.b16 %v134, %v131
    %v162 = vpack.c.b16 %v138, %v135
    %v163 = vpack.c.b16 %v139, %v136
    %v164 = vpack.c.b16 %v140, %v137
    %v165 = vpack.c.b16 %v144, %v141
    %v166 = vpack.c.b16 %v145, %v142
    %v167 = vpack.c.b16 %v146, %v143
    %v168 = vpack.c.b16 %v147, %v147
    %v169 = vpack.c.b16 %v148, %v148
    %v170 = vpack.c.b16 %v149, %v149
    %v221 = vunpack.c.l.b16 %v42
    %v222 = vunpack.c.l.b16 %v43
    %v223 = vunpack.c.l.b16 %v44
    %v224 = vunpack.c.l.b16 %v45
    %v225 = vunpack.c.l.b16 %v46
    %v226 = vunpack.c.l.b16 %v47
    %v227 = vunpack.c.l.b16 %v48
    %v228 = vunpack.c.l.b16 %v49
    %v229 = vunpack.c.l.b16 %v50
    %v230 = vunpack.c.l.b16 %v51
    %v231 = vunpack.c.l.b16 %v52
    %v232 = vunpack.c.l.b16 %v53
    %v233 = vunpack.c.l.b16 %v54
    %v234 = vunpack.c.l.b16 %v55
    %v235 = vunpack.c.l.b16 %v56
    %v236 = vunpack.c.l.b16 %v57
    %v237 = vunpack.c.l.b16 %v58
    %v238 = vunpack.c.l.b16 %v59
    %v239 = vunpack.c.l.b16 %v60
    %v240 = vunpack.c.l.b16 %v61
    %v241 = vunpack.c.l.b16 %v62
    %v242 = vunpack.c.l.b16 %v63
    %v243 = vunpack.c.l.b16 %v64
    %v244 = vunpack.c.l.b16 %v65
    %v245 = vunpack.c.l.b16 %v66
    %v246 = vunpack.c.l.b16 %v67
    %v247 = vunpack.c.l.b16 %v68
    %v248 = vunpack.c.l.b16 %v69
    %v249 = vunpack.c.l.b16 %v70
    %v250 = vunpack.c.l.b16 %v71
    %v251 = vunpack.c.l.b16 %v72
    %v252 = vunpack.c.l.b16 %v73
    %v253 = vunpack.c.l.b16 %v74
    %v254 = vunpack.c.l.b16 %v75
    %v255 = vunpack.c.l.b16 %v76
    %v256 = vunpack.c.l.b16 %v77
    %v257 = vpack.c.b16 %v222, %v221
    %v258 = vpack.c.b16 %v224, %v223
    %v259 = vpack.c.b16 %v226, %v225
    %v260 = vpack.c.b16 %v228, %v227
    %v261 = vpack.c.b16 %v230, %v229
    %v262 = vpack.c.b16 %v232, %v231
    %v263 = vpack.c.b16 %v234, %v233
    %v264 = vpack.c.b16 %v236, %v235
    %v265 = vpack.c.b16 %v238, %v237
    %v266 = vpack.c.b16 %v240, %v239
    %v267 = vpack.c.b16 %v242, %v241
    %v268 = vpack.c.b16 %v244, %v243
    %v269 = vpack.c.b16 %v246, %v245
    %v270 = vpack.c.b16 %v248, %v247
    %v271 = vpack.c.b16 %v250, %v249
    %v272 = vpack.c.b16 %v252, %v251
    %v273 = vpack.c.b16 %v254, %v253
    %v274 = vpack.c.b16 %v256, %v255
    %vm293 = vcmask 261120
    %v295 = vsel %vm293, %v152, 0
    %v298 = vsel %vm293, %v155, 0
    %v301 = vsel %vm293, %v158, 0
    %v304 = vsel %vm293, %v161, 0
    %v307 = vsel %vm293, %v164, 0
    %v310 = vsel %vm293, %v167, 0
    %v313 = vsel %vm293, %v170, 0
    %315 = vmatprep.subr.bf16.mxu0 0
    %316 = vmatpush1.bf16.msra.mxu0 %v257
    %317 = vmatprep.subr.bf16.mxu0 0
    %318 = vmatpush1.bf16.msra.mxu0 %v258
    %319 = vmatprep.subr.bf16.mxu0 0
    %320 = vmatpush1.bf16.msra.mxu0 %v259
    %321 = vmatprep.subr.bf16.mxu0 0
    %322 = vmatpush1.bf16.msra.mxu0 %v260
    %323 = vmatprep.subr.bf16.mxu0 0
    %324 = vmatpush1.bf16.msra.mxu0 %v261
    %325 = vmatprep.subr.bf16.mxu0 0
    %326 = vmatpush1.bf16.msra.mxu0 %v262
    %327 = vmatprep.subr.bf16.mxu0 0
    %328 = vmatpush1.bf16.msra.mxu0 %v263
    %329 = vmatprep.subr.bf16.mxu0 0
    %330 = vmatpush1.bf16.msra.mxu0 %v264
    %331 = vmatprep.subr.bf16.mxu0 0
    %332 = vmatpush1.bf16.msra.mxu0 %v265
    %333 = vmatprep.subr.bf16.mxu0 0
    %334 = vmatpush1.bf16.msra.mxu0 %v266
    %335 = vmatprep.subr.bf16.mxu0 0
    %336 = vmatpush1.bf16.msra.mxu0 %v267
    %337 = vmatprep.subr.bf16.mxu0 0
    %338 = vmatpush1.bf16.msra.mxu0 %v268
    %339 = vmatprep.subr.bf16.mxu0 0
    %340 = vmatpush1.bf16.msra.mxu0 %v269
    %341 = vmatprep.subr.bf16.mxu0 0
    %342 = vmatpush1.bf16.msra.mxu0 %v270
    %343 = vmatprep.subr.bf16.mxu0 0
    %344 = vmatpush1.bf16.msra.mxu0 %v271
    %345 = vmatprep.subr.bf16.mxu0 0
    %346 = vmatpush1.bf16.msra.mxu0 %v272
    %347 = vmatprep.mubr.bf16.mxu0 %v151
    %348 = vmatmul.mubr.bf16.gmra.mrb[0].mxu0 %v150
    %v349 = vpop.f32.mrb[0].mxu0
    %v350 = vadd.f32 %v83, %v349
    %v351 = vpop.f32.mrb[0].mxu0
    %v352 = vpop.f32.mrb[0].mxu0
    %v353 = vadd.f32 %v83, %v352
    %v354 = vpop.f32.mrb[0].mxu0
    %355 = vmatprep.mubr.bf16.mxu0 %v154
    %356 = vmatmul.mubr.bf16.gmra.mrb[0].mxu0 %v153
    %v357 = vpop.f32.mrb[0].mxu0
    %v358 = vadd.f32 %v83, %v357
    %v359 = vpop.f32.mrb[0].mxu0
    %v360 = vpop.f32.mrb[0].mxu0
    %v361 = vadd.f32 %v83, %v360
    %v362 = vpop.f32.mrb[0].mxu0
    %363 = vmatprep.mubr.bf16.mxu0 %v157
    %364 = vmatmul.mubr.bf16.gmra.mrb[0].mxu0 %v156
    %v365 = vpop.f32.mrb[0].mxu0
    %v366 = vadd.f32 %v83, %v365
    %v367 = vpop.f32.mrb[0].mxu0
    %v368 = vpop.f32.mrb[0].mxu0
    %v369 = vadd.f32 %v83, %v368
    %v370 = vpop.f32.mrb[0].mxu0
    %371 = vmatprep.mubr.bf16.mxu0 %v160
    %372 = vmatmul.mubr.bf16.gmra.mrb[0].mxu0 %v159
    %v373 = vpop.f32.mrb[0].mxu0
    %v374 = vadd.f32 %v83, %v373
    %v375 = vpop.f32.mrb[0].mxu0
    %v376 = vpop.f32.mrb[0].mxu0
    %v377 = vadd.f32 %v83, %v376
    %v378 = vpop.f32.mrb[0].mxu0
    %379 = vmatprep.mubr.bf16.mxu0 %v163
    %380 = vmatmul.mubr.bf16.gmra.mrb[0].mxu0 %v162
    %v381 = vpop.f32.mrb[0].mxu0
    %v382 = vadd.f32 %v83, %v381
    %v383 = vpop.f32.mrb[0].mxu0
    %v384 = vpop.f32.mrb[0].mxu0
    %v385 = vadd.f32 %v83, %v384
    %v386 = vpop.f32.mrb[0].mxu0
    %387 = vmatprep.mubr.bf16.mxu0 %v166
    %388 = vmatmul.mubr.bf16.gmra.mrb[0].mxu0 %v165
    %v389 = vpop.f32.mrb[0].mxu0
    %v390 = vadd.f32 %v83, %v389
    %v391 = vpop.f32.mrb[0].mxu0
    %v392 = vpop.f32.mrb[0].mxu0
    %v393 = vadd.f32 %v83, %v392
    %v394 = vpop.f32.mrb[0].mxu0
    %395 = vmatprep.mubr.bf16.mxu0 %v169
    %396 = vmatmul.mubr.bf16.gmra.mrb[0].mxu0 %v168
    %v397 = vpop.f32.mrb[0].mxu0
    %v398 = vadd.f32 %v83, %v397
    %v399 = vpop.f32.mrb[0].mxu0
    %v400 = vpop.f32.mrb[0].mxu0
    %v401 = vpop.f32.mrb[0].mxu0
    %402 = vdwg.mxu0
    %403 = vmatprep.subr.bf16.mxu0 0
    %404 = vmatpush1.bf16.msra.mxu0 %v273
    %405 = vmatprep.subr.bf16.mxu0 0
    %406 = vmatpush1.bf16.msra.mxu0 %v274
    %407 = vmatprep.subr.bf16.mxu0 0
    %408 = vmatpush1.bf16.msra.mxu0 0
    %409 = vmatprep.subr.bf16.mxu0 0
    %410 = vmatpush1.bf16.msra.mxu0 0
    %411 = vmatprep.subr.bf16.mxu0 0
    %412 = vmatpush1.bf16.msra.mxu0 0
    %413 = vmatprep.subr.bf16.mxu0 0
    %414 = vmatpush1.bf16.msra.mxu0 0
    %415 = vmatprep.subr.bf16.mxu0 0
    %416 = vmatpush1.bf16.msra.mxu0 0
    %417 = vmatprep.subr.bf16.mxu0 0
    %418 = vmatpush1.bf16.msra.mxu0 0
    %419 = vmatprep.subr.bf16.mxu0 0
    %420 = vmatpush1.bf16.msra.mxu0 0
    %421 = vmatprep.subr.bf16.mxu0 0
    %422 = vmatpush1.bf16.msra.mxu0 0
    %423 = vmatprep.subr.bf16.mxu0 0
    %424 = vmatpush1.bf16.msra.mxu0 0
    %425 = vmatprep.subr.bf16.mxu0 0
    %426 = vmatpush1.bf16.msra.mxu0 0
    %427 = vmatprep.subr.bf16.mxu0 0
    %428 = vmatpush1.bf16.msra.mxu0 0
    %429 = vmatprep.subr.bf16.mxu0 0
    %430 = vmatpush1.bf16.msra.mxu0 0
    %431 = vmatprep.subr.bf16.mxu0 0
    %432 = vmatpush1.bf16.msra.mxu0 0
    %433 = vmatprep.subr.bf16.mxu0 0
    %434 = vmatpush1.bf16.msra.mxu0 0
    %435 = vmatprep.mubr.bf16.mxu0 0
    %436 = vmatmul.mubr.bf16.gmra.mrb[0].mxu0 %v295
    %v437 = vpop.f32.mrb[0].mxu0
    %v438 = vadd.f32 %v350, %v437
    %v439 = vpop.f32.mrb[0].mxu0
    %v440 = vpop.f32.mrb[0].mxu0
    %v441 = vadd.f32 %v353, %v440
    %v442 = vpop.f32.mrb[0].mxu0
    %443 = vmatprep.mubr.bf16.mxu0 0
    %444 = vmatmul.mubr.bf16.gmra.mrb[0].mxu0 %v298
    %v445 = vpop.f32.mrb[0].mxu0
    %v446 = vadd.f32 %v358, %v445
    %v447 = vpop.f32.mrb[0].mxu0
    %v448 = vpop.f32.mrb[0].mxu0
    %v449 = vadd.f32 %v361, %v448
    %v450 = vpop.f32.mrb[0].mxu0
    %451 = vmatprep.mubr.bf16.mxu0 0
    %452 = vmatmul.mubr.bf16.gmra.mrb[0].mxu0 %v301
    %v453 = vpop.f32.mrb[0].mxu0
    %v454 = vadd.f32 %v366, %v453
    %v455 = vpop.f32.mrb[0].mxu0
    %v456 = vpop.f32.mrb[0].mxu0
    %v457 = vadd.f32 %v369, %v456
    %v458 = vpop.f32.mrb[0].mxu0
    %459 = vmatprep.mubr.bf16.mxu0 0
    %460 = vmatmul.mubr.bf16.gmra.mrb[0].mxu0 %v304
    %v461 = vpop.f32.mrb[0].mxu0
    %v462 = vadd.f32 %v374, %v461
    %v463 = vpop.f32.mrb[0].mxu0
    %v464 = vpop.f32.mrb[0].mxu0
    %v465 = vadd.f32 %v377, %v464
    %v466 = vpop.f32.mrb[0].mxu0
    %467 = vmatprep.mubr.bf16.mxu0 0
    %468 = vmatmul.mubr.bf16.gmra.mrb[0].mxu0 %v307
    %v469 = vpop.f32.mrb[0].mxu0
    %v470 = vadd.f32 %v382, %v469
    %v471 = vpop.f32.mrb[0].mxu0
    %v472 = vpop.f32.mrb[0].mxu0
    %v473 = vadd.f32 %v385, %v472
    %v474 = vpop.f32.mrb[0].mxu0
    %475 = vmatprep.mubr.bf16.mxu0 0
    %476 = vmatmul.mubr.bf16.gmra.mrb[0].mxu0 %v310
    %v477 = vpop.f32.mrb[0].mxu0
    %v478 = vadd.f32 %v390, %v477
    %v479 = vpop.f32.mrb[0].mxu0
    %v480 = vpop.f32.mrb[0].mxu0
    %v481 = vadd.f32 %v393, %v480
    %v482 = vpop.f32.mrb[0].mxu0
    %483 = vmatprep.mubr.bf16.mxu0 0
    %484 = vmatmul.mubr.bf16.gmra.mrb[0].mxu0 %v313
    %v485 = vpop.f32.mrb[0].mxu0
    %v486 = vadd.f32 %v398, %v485
    %v487 = vpop.f32.mrb[0].mxu0
    %v488 = vpop.f32.mrb[0].mxu0
    %v489 = vpop.f32.mrb[0].mxu0
    %490 = vdwg.mxu0
    %491 = vst [vmem:[#allocation2] sm:$0xff] %v438
    %492 = vst [vmem:[#allocation2 + $0x8] sm:$0xff] %v441
    %493 = vst [vmem:[#allocation2 + $0x10] sm:$0xff] %v446
    %494 = vst [vmem:[#allocation2 + $0x18] sm:$0xff] %v449
    %495 = vst [vmem:[#allocation2 + $0x20] sm:$0xff] %v454
    %496 = vst [vmem:[#allocation2 + $0x28] sm:$0xff] %v457
    %497 = vst [vmem:[#allocation2 + $0x30] sm:$0xff] %v462
    %498 = vst [vmem:[#allocation2 + $0x38] sm:$0xff] %v465
    %499 = vst [vmem:[#allocation2 + $0x40] sm:$0xff] %v470
    %500 = vst [vmem:[#allocation2 + $0x48] sm:$0xff] %v473
    %501 = vst [vmem:[#allocation2 + $0x50] sm:$0xff] %v478
    %502 = vst [vmem:[#allocation2 + $0x58] sm:$0xff] %v481
    %503 = vst [vmem:[#allocation2 + $0x60] sm:$0xff] %v486
    // Predicated region
    $region14: #{faceconv_forward.1} parent=1 // pred_check
      _
    $region15: #{faceconv_forward.1} parent=1 // pred_check_branch
      %505 = sbr.rel (0) target = $region17
    $region16: #{faceconv_forward.1} parent=1 // pred_region
      %s507 = ssub.s32 1664, 1664
      %508 = vsyncadd [#allocation3], %s507
      %s509 = sshll.u32 [#allocation2], 4
      %s510 = int_to_ptr.vmem [resolvable:$true] %s509
      %515 = dma.vmem_to_hbm [thread:$0]  %s510, 1664, %s3, [#allocation3], 128, 128, 8
    $region17: #{faceconv_forward.1} parent=1 // pred_fallthru
      _
    // Predicated region
    $region18: #{faceconv_forward.1} parent=1 // pred_check
      _
    $region19: #{faceconv_forward.1} parent=1 // pred_check_branch
      %517 = sbr.rel (0) target = $region21
    $region20: #{faceconv_forward.1} parent=1 // pred_region
      %518 = dma.done [#allocation3], 1664
    $region21: #{faceconv_forward.1} parent=1 // pred_fallthru
      _
    %519 = vsyncpa [#allocation3], 1

</llo_original>
